<compile_context>
chip_gen: v6e
topology: v6e:2x2x1
jax: 0.10.0
libtpu: 0.0.40
codegen_flags: <defaults>
</compile_context>

<pallas_src>
import jax
import jax.numpy as jnp
from jax.experimental import pallas as pl
from jax.experimental.pallas import tpu as pltpu


def _round_up(x, m):
    return ((x + m - 1) // m) * m


def _cdiv(a, b):
    return (a + b - 1) // b


# ------------------------------------------------------------------------------- kernel ----
def fits_kernel(x_ref, k_ref, b_ref, out_ref):
    """out = x @ K + bias  — single MXU matmul, f32 accumulation, cast only at the store."""
    x = x_ref[...].astype(jnp.float32)
    y = jnp.dot(x, k_ref[...], preferred_element_type=jnp.float32)
    y = y + b_ref[...]
    out_ref[...] = y.astype(out_ref.dtype)


def _rows_matmul(rows, k_mat, bias_row, out_dtype, *, row_block, min_steps=8,
                 vmem_budget=40 * 1024 * 1024):
    """Tiled rows[M, Din] @ k_mat[Din, Dout] + bias_row[1, Dout] -> [M_pad, Dout]."""
    m, d_in = rows.shape
    d_out = k_mat.shape[1]
    in_bytes = rows.dtype.itemsize
    out_bytes = jnp.dtype(out_dtype).itemsize
    gran = max(8, 32 // in_bytes)                       # sublane granularity: 8 f32 / 16 bf16

    # Row tile: as large as the VMEM budget allows, but small enough that the 1-D "parallel"
    # grid keeps >= min_steps steps (so v7x's two TensorCores both get work).
    tm = min(row_block, _round_up(m, gran))
    if _cdiv(m, tm) < min_steps:
        tm = min(tm, max(gran, _round_up(_cdiv(m, min_steps), gran)))
    const_bytes = (d_in * d_out + d_out) * 4            # resident K + bias (f32)
    per_row = 2 * (d_in * in_bytes + d_out * out_bytes)  # double-buffered x / out tiles
    tm_cap = max(gran, ((vmem_budget - 2 * const_bytes) // per_row) // gran * gran)
    tm = max(gran, min(tm, tm_cap))

    m_pad = _round_up(m, tm)
    if m_pad != m:                                      # deterministic zero padding of rows
        rows = jnp.pad(rows, ((0, m_pad - m), (0, 0)))

    cost = pl.CostEstimate(
        flops=2 * m_pad * d_in * d_out,
        transcendentals=0,
        bytes_accessed=(m_pad * d_in * in_bytes + m_pad * d_out * out_bytes
                        + (d_in * d_out + d_out) * 4))

    return pl.pallas_call(
        fits_kernel,
        out_shape=jax.ShapeDtypeStruct((m_pad, d_out), out_dtype),
        grid=(m_pad // tm,),
        in_specs=[
            pl.BlockSpec((tm, d_in), lambda i: (i, 0)),      # streamed x rows
            pl.BlockSpec((d_in, d_out), lambda i: (0, 0)),   # resident fused operator
            pl.BlockSpec((1, d_out), lambda i: (0, 0)),      # resident bias row
        ],
        out_specs=pl.BlockSpec((tm, d_out), lambda i: (i, 0)),
        compiler_params=pltpu.CompilerParams(
            dimension_semantics=("parallel",),
            vmem_limit_bytes=64 * 1024 * 1024),
        cost_estimate=cost,
    )(rows, k_mat, bias_row)


# ------------------------------------------------------------------- host-side fusion ----
def _fits_operator(weight, bias, *, seq_len, in_len):
    """Fuse truncated-rfft -> complex Linear -> zero-padded irfft -> *length_ratio into one
    real operator K [in_len, seq_len] and an output-space bias yb [seq_len].  Exact by
    linearity; built once per weight, in HIGHEST precision."""
    up_freq, cut_freq = weight.shape
    ratio = seq_len / in_len
    hi = jax.lax.Precision.HIGHEST
    # rfft(x)[f] = sum_t x[t] * F[t, f]   (truncated to cut_freq bins)
    F = jnp.fft.rfft(jnp.eye(in_len, dtype=jnp.float32), axis=1)[:, :cut_freq]     # [T, cf]
    A = jnp.matmul(F, jnp.transpose(weight), precision=hi)                           # [T, uf]
    # irfft of the zero-padded spectrum as two real matrices (unit spectra => exact
    # DC / Nyquist conventions), with length_ratio folded in.
    n_bins = seq_len // 2 + 1
    basis = jnp.eye(up_freq, n_bins, dtype=jnp.complex64)
    I_r = jnp.fft.irfft(basis, n=seq_len, axis=1).astype(jnp.float32) * ratio        # [uf, S]
    I_i = jnp.fft.irfft(1j * basis, n=seq_len, axis=1).astype(jnp.float32) * ratio   # [uf, S]
    K = (jnp.matmul(jnp.real(A).astype(jnp.float32), I_r, precision=hi)
         + jnp.matmul(jnp.imag(A).astype(jnp.float32), I_i, precision=hi))           # [T, S]
    yb = (jnp.matmul(jnp.real(bias).astype(jnp.float32)[None, :], I_r, precision=hi)
          + jnp.matmul(jnp.imag(bias).astype(jnp.float32)[None, :], I_i, precision=hi))[0]
    return K, yb


def make_fits_forward(weight, bias, *, seq_len, pred_len, enc_in, individual=False,
                      mode='pre-train', row_block=512,
                      fused_channel_bytes=8 * 1024 * 1024):
    """Build a jitted FITS forward closed over precomputed constants (built once per weight).

    weight: [up_freq, cut_freq] complex64 (nn.Linear.weight), bias: [up_freq] complex64.
    Returned forward maps x [B, N, in_len, enc_in] -> [B, N, seq_len, enc_in]."""
    if individual:
        # TODO(synk): individual=True (one complex Linear per channel) is not implemented.
        raise NotImplementedError("FITS Pallas kernel only supports individual=False")
    in_len = seq_len - pred_len if mode == 'pre-train' else seq_len
    C = enc_in
    K, yb = _fits_operator(weight, bias, seq_len=seq_len, in_len=in_len)

    # Path A (default, small enc_in): embed the shared per-channel operator as a
    # channel-block-diagonal matrix so x.reshape(B*N, T*C) @ K_big lands directly in the
    # module's [B, N, seq_len, C] layout -> zero wrapper-side transpose / copy passes.
    kbig_bytes = in_len * C * seq_len * C * 4
    fuse_channels = kbig_bytes <= fused_channel_bytes
    if fuse_channels:
        eye_c = jnp.eye(C, dtype=jnp.float32)
        k_mat = (K[:, None, :, None] * eye_c[None, :, None, :]
                 ).reshape(in_len * C, seq_len * C)
        b_row = jnp.repeat(yb, C)[None, :]
    else:
        # Path B (large enc_in): channel-major rows with a lane-dense (multiple-of-128)
        # padded output; costs one transpose pass over x and one over y, but keeps the
        # resident operator small.
        s_pad = _round_up(seq_len, 128)
        k_mat = jnp.zeros((in_len, s_pad), jnp.float32).at[:, :seq_len].set(K)
        b_row = jnp.zeros((1, s_pad), jnp.float32).at[0, :seq_len].set(yb)

    @jax.jit
    def forward(x):
        B, N, T, Cx = x.shape
        assert T == in_len and Cx == C, (x.shape, in_len, C)
        if fuse_channels:
            rows = x.reshape(B * N, T * C)                 # free reshape, no transpose
            out = _rows_matmul(rows, k_mat, b_row, x.dtype, row_block=row_block)
            return out[:B * N].reshape(B, N, seq_len, C)
        rows = jnp.transpose(x, (0, 1, 3, 2)).reshape(B * N * C, T)
        out = _rows_matmul(rows, k_mat, b_row, x.dtype, row_block=row_block)
        y = out[:B * N * C, :seq_len].reshape(B, N, C, seq_len)
        return jnp.transpose(y, (0, 1, 3, 2))

    return forward


# ------------------------------------------------------------------------ pure-JAX ref ----
def fits_ref(x, weight, bias, *, seq_len):
    """Pure-JAX mirror of FITS.forward (individual=False), following the torch code."""
    B, N, in_len, C = x.shape
    up_freq, cut_freq = weight.shape
    length_ratio = seq_len / in_len
    hi = jax.lax.Precision.HIGHEST
    spec = jnp.fft.rfft(x, axis=2)[:, :, :cut_freq, :]                   # [B,N,cf,C] complex
    spec_p = jnp.transpose(spec, (0, 1, 3, 2))                           # [B,N,C,cf]
    up = jnp.einsum("bncf,of->bnco", spec_p, weight, precision=hi) + bias
    up = jnp.transpose(up, (0, 1, 3, 2))                                 # [B,N,uf,C]
    n_bins = seq_len // 2 + 1
    padded = jnp.zeros((B, N, n_bins, C), dtype=up.dtype).at[:, :, :up_freq, :].set(up)
    return jnp.fft.irfft(padded, n=seq_len, axis=2) * length_ratio


if __name__ == "__main__":
    # Module config: mode='pre-train', individual=False
    seq_len, pred_len = 64, 32                 # in_len = 32
    cut_freq = 8
    B, N, C = 2, 3, 4                          # batch, nodes, enc_in channels
    in_len = seq_len - pred_len
    up_freq = int(cut_freq * (seq_len / in_len))   # 16

    key = jax.random.PRNGKey(0)
    kx, kwr, kwi, kbr, kbi = jax.random.split(key, 5)
    x = jax.random.normal(kx, (B, N, in_len, C), dtype=jnp.float32)
    weight = (jax.random.normal(kwr, (up_freq, cut_freq), jnp.float32) * 0.1
              + 1j * jax.random.normal(kwi, (up_freq, cut_freq), jnp.float32) * 0.1
              ).astype(jnp.complex64)
    bias = (jax.random.normal(kbr, (up_freq,), jnp.float32) * 0.01
            + 1j * jax.random.normal(kbi, (up_freq,), jnp.float32) * 0.01
            ).astype(jnp.complex64)

    y_ref = fits_ref(x, weight, bias, seq_len=seq_len)

    # Default path: channel-block-diagonal fused operator (zero wrapper layout passes).
    fwd = make_fits_forward(weight, bias, seq_len=seq_len, pred_len=pred_len, enc_in=C)
    y = fwd(x)
    jax.block_until_ready(y)
    assert y.shape == (B, N, seq_len, C)
    err = float(jnp.max(jnp.abs(y - y_ref)))
    assert jnp.allclose(y, y_ref, atol=1e-3, rtol=1e-3), f"fused-channel path max err {err}"

    # Large-enc_in fallback path (channel-major rows), forced here for coverage.
    fwd_b = make_fits_forward(weight, bias, seq_len=seq_len, pred_len=pred_len, enc_in=C,
                              fused_channel_bytes=0)
    y_b = fwd_b(x)
    jax.block_until_ready(y_b)
    err_b = float(jnp.max(jnp.abs(y_b - y_ref)))
    assert jnp.allclose(y_b, y_ref, atol=1e-3, rtol=1e-3), f"fallback path max err {err_b}"

    print("KERNEL_OK")
</pallas_src>

<mosaic_0001>
module attributes {stable_mosaic.version = 11 : i64} {
  func.func @fits_kernel(%arg0: i32, %arg1: memref<8x128xf32, #tpu.memory_space<vmem>>, %arg2: memref<128x256xf32, #tpu.memory_space<vmem>>, %arg3: memref<1x256xf32, #tpu.memory_space<vmem>>, %arg4: memref<8x256xf32, #tpu.memory_space<vmem>>) attributes {dimension_semantics = [#tpu.dimension_semantics<parallel>], iteration_bounds = array<i64: 1>, scalar_prefetch = 0 : i64, scratch_operands = 0 : i64, tpu.core_type = #tpu.core_type<tc>, window_params = [{transform_indices = @transform_0, window_bounds = array<i64: 8, 128>}, {pipeline_mode = #tpu.pipeline_mode<synchronous>, transform_indices = @transform_1, window_bounds = array<i64: 128, 256>}, {pipeline_mode = #tpu.pipeline_mode<synchronous>, transform_indices = @transform_2, window_bounds = array<i64: 1, 256>}, {transform_indices = @transform_3, window_bounds = array<i64: 8, 256>}]} {
    %c0 = arith.constant 0 : index
    %c0_0 = arith.constant 0 : index
    %0 = vector.load %arg1[%c0, %c0_0] : memref<8x128xf32, #tpu.memory_space<vmem>>, vector<8x128xf32>
    %c0_1 = arith.constant 0 : index
    %c0_2 = arith.constant 0 : index
    %1 = vector.load %arg2[%c0_1, %c0_2] : memref<128x256xf32, #tpu.memory_space<vmem>>, vector<128x256xf32>
    %cst = arith.constant dense<0.000000e+00> : vector<8x256xf32>
    %2 = tpu.matmul %0, %1, %cst {dimension_numbers = #tpu.dot_dimension_numbers<[1], [0], [0], [1], [0, 0, 1, 1], [], []>} : vector<8x128xf32>, vector<128x256xf32>, vector<8x256xf32> -> vector<8x256xf32>
    %c0_3 = arith.constant 0 : index
    %c0_4 = arith.constant 0 : index
    %3 = vector.load %arg3[%c0_3, %c0_4] : memref<1x256xf32, #tpu.memory_space<vmem>>, vector<1x256xf32>
    %4 = vector.broadcast %3 : vector<1x256xf32> to vector<8x256xf32>
    %5 = arith.addf %2, %4 : vector<8x256xf32>
    %c0_5 = arith.constant 0 : index
    %c0_6 = arith.constant 0 : index
    %6 = vector.load %arg4[%c0_5, %c0_6] : memref<8x256xf32, #tpu.memory_space<vmem>>, vector<8x256xf32>
    tpu.vector_store %arg4[%c0_5, %c0_6], %5 {strides = array<i32>} : memref<8x256xf32, #tpu.memory_space<vmem>>, vector<8x256xf32>,
    return
  }
  func.func @transform_0(%arg0: i32) -> (i32, i32) {
    %c0_i32 = arith.constant 0 : i32
    %c0_i32_0 = arith.constant 0 : i32
    return %arg0, %c0_i32 : i32, i32
  }
  func.func @transform_1(%arg0: i32) -> (i32, i32) {
    %c0_i32 = arith.constant 0 : i32
    %c0_i32_0 = arith.constant 0 : i32
    %c0_i32_1 = arith.constant 0 : i32
    return %c0_i32, %c0_i32_0 : i32, i32
  }
  func.func @transform_2(%arg0: i32) -> (i32, i32) {
    %c0_i32 = arith.constant 0 : i32
    %c0_i32_0 = arith.constant 0 : i32
    %c0_i32_1 = arith.constant 0 : i32
    return %c0_i32, %c0_i32_0 : i32, i32
  }
  func.func @transform_3(%arg0: i32) -> (i32, i32) {
    %c0_i32 = arith.constant 0 : i32
    %c0_i32_0 = arith.constant 0 : i32
    return %arg0, %c0_i32 : i32, i32
  }
}

</mosaic_0001>

<llo_original>
// kernel: forward.1
$region0: #{forward.1}
  #allocation0 [shape = 'u32[]', space=smem, size = 0x4, offset = 0x4, fixed_abs, tag = 'smem constant byte address 0x4 - core index']
  #allocation1 [shape = 'u32[144,128]{1,0:T(1,128)}', space=vmem, size = 0x12000, scoped, tag = 'internal scratch']
  %s0 = inlined_call_operand.vmem [shape: f32[8,128], index: 0, kind: input, shape index: {}]
  %s1 = inlined_call_operand.vmem [shape: f32[128,256], index: 1, kind: input, shape index: {}]
  %s2 = inlined_call_operand.vmem [shape: f32[1,256], index: 2, kind: input, shape index: {}]
  %s3 = inlined_call_operand.vmem [shape: f32[8,256], index: 3, kind: output, shape index: {}]
  %s4 = sld [smem:[#allocation0]]
  $region22: #{forward.1} parent=0
    _
  %s6 = ssub.s32 1, %s4
  %s7 = scalar_select 0, %s6, %s4
  // Predicated region
  $region2: #{forward.1} parent=0 // pred_check
    _
  $region3: #{forward.1} parent=0 // pred_check_branch
    %9 = sbr.rel (0) target = $region5
  $region4: #{forward.1} parent=0 // pred_region
    _
  $region5: #{forward.1} parent=0 // pred_fallthru
    _
  // Predicated region
  $region6: #{forward.1} parent=0 // pred_check
    _
  $region7: #{forward.1} parent=0 // pred_check_branch
    %11 = sbr.rel (0) target = $region9
  $region8: #{forward.1} parent=0 // pred_region
    _
  $region9: #{forward.1} parent=0 // pred_fallthru
    _
  // Predicated region
  $region10: #{forward.1} parent=0 // pred_check
    _
  $region11: #{forward.1} parent=0 // pred_check_branch
    %13 = sbr.rel (0) target = $region13
  $region12: #{forward.1} parent=0 // pred_region
    _
  $region13: #{forward.1} parent=0 // pred_fallthru
    _
  %v14 = vld [vmem:[%s0] sm:$0xff]
  %v15 = vld [vmem:[%s1] sm:$0xff]
  %v16 = vld [vmem:[%s1 + $0x8] sm:$0xff]
  %v17 = vld [vmem:[%s1 + $0x10] sm:$0xff]
  %v18 = vld [vmem:[%s1 + $0x18] sm:$0xff]
  %v19 = vld [vmem:[%s1 + $0x20] sm:$0xff]
  %v20 = vld [vmem:[%s1 + $0x28] sm:$0xff]
  %v21 = vld [vmem:[%s1 + $0x30] sm:$0xff]
  %v22 = vld [vmem:[%s1 + $0x38] sm:$0xff]
  %v23 = vld [vmem:[%s1 + $0x40] sm:$0xff]
  %v24 = vld [vmem:[%s1 + $0x48] sm:$0xff]
  %v25 = vld [vmem:[%s1 + $0x50] sm:$0xff]
  %v26 = vld [vmem:[%s1 + $0x58] sm:$0xff]
  %v27 = vld [vmem:[%s1 + $0x60] sm:$0xff]
  %v28 = vld [vmem:[%s1 + $0x68] sm:$0xff]
  %v29 = vld [vmem:[%s1 + $0x70] sm:$0xff]
  %v30 = vld [vmem:[%s1 + $0x78] sm:$0xff]
  %v31 = vld [vmem:[%s1 + $0x80] sm:$0xff]
  %v32 = vld [vmem:[%s1 + $0x88] sm:$0xff]
  %v33 = vld [vmem:[%s1 + $0x90] sm:$0xff]
  %v34 = vld [vmem:[%s1 + $0x98] sm:$0xff]
  %v35 = vld [vmem:[%s1 + $0xa0] sm:$0xff]
  %v36 = vld [vmem:[%s1 + $0xa8] sm:$0xff]
  %v37 = vld [vmem:[%s1 + $0xb0] sm:$0xff]
  %v38 = vld [vmem:[%s1 + $0xb8] sm:$0xff]
  %v39 = vld [vmem:[%s1 + $0xc0] sm:$0xff]
  %v40 = vld [vmem:[%s1 + $0xc8] sm:$0xff]
  %v41 = vld [vmem:[%s1 + $0xd0] sm:$0xff]
  %v42 = vld [vmem:[%s1 + $0xd8] sm:$0xff]
  %v43 = vld [vmem:[%s1 + $0xe0] sm:$0xff]
  %v44 = vld [vmem:[%s1 + $0xe8] sm:$0xff]
  %v45 = vld [vmem:[%s1 + $0xf0] sm:$0xff]
  %v46 = vld [vmem:[%s1 + $0xf8] sm:$0xff]
  %v47 = vld [vmem:[%s2] sm:$0x3]
  %v49 = vlaneseq
  %v50 = vshrl.u32 %v49, 7
  %v51 = vsub.s32 0, %v50
  %v52 = vrot.slane %v47, %v51
  %v53 = vlaneseq
  %v54 = vshrl.u32 %v53, 7
  %v55 = vsub.s32 1, %v54
  %v56 = vrot.slane %v47, %v55
  %59 = vmatprep.subr.mxu0 %v46
  %60 = vmatpush1.msra.mxu0 %v45
  %61 = vmatprep.subr.mxu0 %v44
  %62 = vmatpush1.msra.mxu0 %v43
  %63 = vmatprep.subr.mxu0 %v42
  %64 = vmatpush1.msra.mxu0 %v41
  %65 = vmatprep.subr.mxu0 %v40
  %66 = vmatpush1.msra.mxu0 %v39
  %67 = vmatprep.subr.mxu0 %v38
  %68 = vmatpush1.msra.mxu0 %v37
  %69 = vmatprep.subr.mxu0 %v36
  %70 = vmatpush1.msra.mxu0 %v35
  %71 = vmatprep.subr.mxu0 %v34
  %72 = vmatpush1.msra.mxu0 %v33
  %73 = vmatprep.subr.mxu0 %v32
  %74 = vmatpush1.msra.mxu0 %v31
  %75 = vmatprep.subr.mxu0 %v30
  %76 = vmatpush1.msra.mxu0 %v29
  %77 = vmatprep.subr.mxu0 %v28
  %78 = vmatpush1.msra.mxu0 %v27
  %79 = vmatprep.subr.mxu0 %v26
  %80 = vmatpush1.msra.mxu0 %v25
  %81 = vmatprep.subr.mxu0 %v24
  %82 = vmatpush1.msra.mxu0 %v23
  %83 = vmatprep.subr.mxu0 %v22
  %84 = vmatpush1.msra.mxu0 %v21
  %85 = vmatprep.subr.mxu0 %v20
  %86 = vmatpush1.msra.mxu0 %v19
  %87 = vmatprep.subr.mxu0 %v18
  %88 = vmatpush1.msra.mxu0 %v17
  %89 = vmatprep.subr.mxu0 %v16
  %90 = vmatpush1.msra.mxu0 %v15
  %91 = vmatprep.subr.mxu0 0.0
  %92 = vmatpush2.msra.mxu0 0.0
  %93 = vmatprep.subr.mxu0 0.0
  %94 = vmatpush2.msra.mxu0 0.0
  %95 = vmatprep.subr.mxu0 0.0
  %96 = vmatpush2.msra.mxu0 0.0
  %97 = vmatprep.subr.mxu0 0.0
  %98 = vmatpush2.msra.mxu0 0.0
  %99 = vmatprep.subr.mxu0 0.0
  %100 = vmatpush2.msra.mxu0 0.0
  %101 = vmatprep.subr.mxu0 0.0
  %102 = vmatpush2.msra.mxu0 0.0
  %103 = vmatprep.subr.mxu0 0.0
  %104 = vmatpush2.msra.mxu0 0.0
  %105 = vmatprep.subr.mxu0 0.0
  %106 = vmatpush2.msra.mxu0 0.0
  %107 = vmatprep.subr.mxu0 0.0
  %108 = vmatpush2.msra.mxu0 0.0
  %109 = vmatprep.subr.mxu0 0.0
  %110 = vmatpush2.msra.mxu0 0.0
  %111 = vmatprep.subr.mxu0 0.0
  %112 = vmatpush2.msra.mxu0 0.0
  %113 = vmatprep.subr.mxu0 0.0
  %114 = vmatpush2.msra.mxu0 0.0
  %115 = vmatprep.subr.mxu0 0.0
  %116 = vmatpush2.msra.mxu0 0.0
  %117 = vmatprep.subr.mxu0 0.0
  %118 = vmatpush2.msra.mxu0 0.0
  %119 = vmatprep.subr.mxu0 0.0
  %120 = vmatpush2.msra.mxu0 0.0
  %121 = vmatprep.subr.mxu0 0.0
  %122 = vmatpush2.msra.mxu0 0.0
  %123 = vmatprep.mubr.f32.mxu0 0.0
  %124 = vmatmul.mubr.f32.gmra.mxu0 %v14
  %v125 = vpop.f32.mrf.mxu0
  %v126 = vadd.f32 %v52, %v125
  %v127 = vpop.f32.mrf.mxu0
  %v128 = vadd.f32 %v56, %v127
  %129 = vdwg.mxu0
  %130 = vst [vmem:[%s3] sm:$0xff] %v126
  %131 = vst [vmem:[%s3 + $0x8] sm:$0xff] %v128
  // Predicated region
  $region14: #{forward.1} parent=0 // pred_check
    _
  $region15: #{forward.1} parent=0 // pred_check_branch
    %133 = sbr.rel (0) target = $region17
  $region16: #{forward.1} parent=0 // pred_region
    _
  $region17: #{forward.1} parent=0 // pred_fallthru
    _
  // Predicated region
  $region18: #{forward.1} parent=0 // pred_check
    _
  $region19: #{forward.1} parent=0 // pred_check_branch
    %135 = sbr.rel (0) target = $region21
  $region20: #{forward.1} parent=0 // pred_region
    _
  $region21: #{forward.1} parent=0 // pred_fallthru
    _

</llo_original>
